<compile_context>
chip_gen: v5e
topology: v5e:2x2
jax: 0.10.0
libtpu: 0.0.40
codegen_flags: <defaults>
</compile_context>

<pallas_src>
import functools

import jax
import jax.numpy as jnp
from jax.experimental import pallas as pl
from jax.experimental.pallas import tpu as pltpu

BN_EPS = 1e-5
LANE = 128
SUBLANE = 8


def _round_up(x, m):
    return ((x + m - 1) // m) * m


# ---------------------------------------------------------------------------
# Fused kernel: one grid step per (BatchNorm1d -> Linear [-> ReLU]) layer,
# final max/sum reduction on the last step.  Activation stays in VMEM.
# ---------------------------------------------------------------------------
def _fused_layer_kernel(x_ref, w_ref, v_ref, o_ref, x_sc, *,
                        n_layers, batch, set_n, cin, reduction):
    li = pl.program_id(0)
    m_rows = batch * set_n
    inv_m = 1.0 / float(m_rows)

    # First layer: zero the VMEM-resident activation slab and drop the raw
    # (M, cin) input into its first cin lanes.  Padded lanes stay exactly 0,
    # so BN stats and the zero-padded matmul are exact (no wrapper jnp.pad).
    @pl.when(li == 0)
    def _():
        x_sc[...] = jnp.zeros_like(x_sc)
        x_sc[:, :cin] = x_ref[...]

    x = x_sc[...]                        # (M, C_PAD) f32
    b = v_ref[0:1, :]                    # (1, C_PAD) Linear bias   (0 in padding)
    gw = v_ref[1:2, :]                   # (1, C_PAD) BN weight     (0 in padding)
    gb = v_ref[2:3, :]                   # (1, C_PAD) BN bias       (0 in padding)

    # BatchNorm1d, training mode, biased variance, all in f32 (v5e-safe).
    mean = jnp.sum(x, axis=0, keepdims=True) * inv_m
    centered = x - mean
    var = jnp.sum(centered * centered, axis=0, keepdims=True) * inv_m
    scale = gw * jax.lax.rsqrt(var + BN_EPS)        # gamma folded into one scale
    xn = centered * scale + gb                      # (M, C_PAD), exact 0 in padding

    # Linear on the MXU: bf16 operands, f32 accumulation.
    y = jnp.dot(xn.astype(jnp.bfloat16), w_ref[...],
                preferred_element_type=jnp.float32) + b

    @pl.when(li < n_layers - 1)
    def _():
        x_sc[...] = jnp.maximum(y, 0.0)             # ReLU on all but the last layer

    @pl.when(li == n_layers - 1)
    def _():
        if reduction == "none":
            o_ref[...] = y
        else:
            # N == 8 matches the f32 sublane tile, so this reshape is layout-clean.
            # TODO(synk): if N is ever not a multiple of 8, replace with per-batch
            # jnp.maximum over row slices to avoid an XLU relayout.
            y3 = y.reshape(batch, set_n, y.shape[-1])
            if reduction == "max":
                o_ref[...] = jnp.max(y3, axis=1)
            else:  # "sum"
                o_ref[...] = jnp.sum(y3, axis=1)


# ---------------------------------------------------------------------------
# Parameter packing: 2 stacked lane-dense arrays instead of 4 per layer.
# ---------------------------------------------------------------------------
def pack_params(params):
    """Pack per-layer (W^T, b, bn_w, bn_b) into (L*C_PAD, C_PAD) bf16 weights and
    (L*8, C_PAD) f32 vectors.  Zero padding keeps padded channels exact zeros."""
    max_c = max(max(w.shape[0], w.shape[1]) for (w, _, _, _) in params)
    c_pad = max(LANE, _round_up(max_c, LANE))
    n_layers = len(params)
    w_stack = jnp.zeros((n_layers * c_pad, c_pad), jnp.float32)
    v_stack = jnp.zeros((n_layers * SUBLANE, c_pad), jnp.float32)
    for li, (w, b, gw, gb) in enumerate(params):
        cin, cout = w.shape
        w_stack = w_stack.at[li * c_pad:li * c_pad + cin, :cout].set(w)
        v_stack = v_stack.at[li * SUBLANE + 0, :cout].set(b.reshape(-1))
        v_stack = v_stack.at[li * SUBLANE + 1, :cin].set(gw.reshape(-1))
        v_stack = v_stack.at[li * SUBLANE + 2, :cin].set(gb.reshape(-1))
    return w_stack.astype(jnp.bfloat16), v_stack, c_pad


# ---------------------------------------------------------------------------
# Wrapper (single pallas_call, single launch).  Returns the padded (B, C_PAD)
# slab; first out_size lanes equal the module output, the rest are exact zeros
# (consumer slices — avoids a masked-store / extra XLA op on the hot path).
# ---------------------------------------------------------------------------
def set_transform_forward(set_feats, w_stack, v_stack, *, c_pad, reduction="max"):
    B, N, cin = set_feats.shape
    M = B * N
    n_layers = w_stack.shape[0] // c_pad

    x2d = set_feats.reshape(M, cin)     # metadata-only reshape, no HBM round trip

    in_specs = [
        pl.BlockSpec((M, cin), lambda li: (0, 0)),            # raw input, fetched once
        pl.BlockSpec((c_pad, c_pad), lambda li: (li, 0)),     # layer li weight (bf16)
        pl.BlockSpec((SUBLANE, c_pad), lambda li: (li, 0)),   # layer li b/gw/gb rows
    ]
    if reduction == "none":
        out_shape = jax.ShapeDtypeStruct((M, c_pad), jnp.float32)
        out_spec = pl.BlockSpec((M, c_pad), lambda li: (0, 0))
    else:
        out_shape = jax.ShapeDtypeStruct((B, c_pad), jnp.float32)
        out_spec = pl.BlockSpec((B, c_pad), lambda li: (0, 0))

    return pl.pallas_call(
        functools.partial(
            _fused_layer_kernel,
            n_layers=n_layers, batch=B, set_n=N, cin=cin, reduction=reduction,
        ),
        out_shape=out_shape,
        grid_spec=pltpu.PrefetchScalarGridSpec(
            num_scalar_prefetch=0,
            grid=(n_layers,),
            in_specs=in_specs,
            out_specs=out_spec,
            scratch_shapes=[pltpu.VMEM((M, c_pad), jnp.float32)],  # activation slab
        ),
        compiler_params=pltpu.CompilerParams(
            dimension_semantics=("arbitrary",)),   # layers are sequentially dependent
    )(x2d, w_stack, v_stack)


# ---------------------------------------------------------------------------
# Deterministic parameter construction (synthetic init, shapes from __init__)
# ---------------------------------------------------------------------------
def make_params(key, in_size, hidden_sizes, out_size):
    sizes = [in_size] + list(hidden_sizes) + [out_size]
    params = []
    for cin, cout in zip(sizes[:-1], sizes[1:]):
        key, kw, kb, kgw, kgb = jax.random.split(key, 5)
        w = 0.1 * jax.random.normal(kw, (cin, cout), jnp.float32)        # Linear weight^T
        b = 0.1 * jax.random.normal(kb, (1, cout), jnp.float32)          # Linear bias
        gw = 1.0 + 0.1 * jax.random.normal(kgw, (1, cin), jnp.float32)   # BN weight
        gb = 0.1 * jax.random.normal(kgb, (1, cin), jnp.float32)         # BN bias
        params.append((w, b, gw, gb))
    return params


# ---------------------------------------------------------------------------
# Plain-JAX reference (f32 everywhere) for verification
# ---------------------------------------------------------------------------
def reference_forward(set_feats, params, reduction="max"):
    B, N, _ = set_feats.shape
    x = set_feats
    n_layers = len(params)
    for li, (w, b, gw, gb) in enumerate(params):
        flat = x.reshape(B * N, x.shape[-1])
        mean = jnp.mean(flat, axis=0, keepdims=True)
        var = jnp.mean((flat - mean) ** 2, axis=0, keepdims=True)
        flat = (flat - mean) / jnp.sqrt(var + BN_EPS) * gw + gb
        flat = flat @ w + b
        if li < n_layers - 1:
            flat = jnp.maximum(flat, 0.0)
        x = flat.reshape(B, N, flat.shape[-1])
    if reduction == "none":
        return x
    if reduction == "max":
        return jnp.max(x, axis=1)
    return jnp.sum(x, axis=1)


if __name__ == "__main__":
    key = jax.random.PRNGKey(0)
    k_in, k_par = jax.random.split(key)

    B, N = 2, 8            # batch, set size
    in_size = 4
    hidden_sizes = [32, 32]
    out_size = 16
    reduction = "max"

    set_feats = jax.random.normal(k_in, (B, N, in_size), jnp.float32)
    params = make_params(k_par, in_size, hidden_sizes, out_size)
    w_stack, v_stack, c_pad = pack_params(params)

    fwd = jax.jit(functools.partial(set_transform_forward,
                                    c_pad=c_pad, reduction=reduction))
    out_padded = jax.block_until_ready(fwd(set_feats, w_stack, v_stack))
    out = out_padded[:, :out_size]     # consumer-side slice of the lane-dense slab

    ref = reference_forward(set_feats, params, reduction)
    assert out.shape == (B, out_size), out.shape
    # bf16 matmul operands (f32 accumulate, f32 BN) -> relaxed tolerance vs f32 reference.
    assert jnp.allclose(out, ref, rtol=5e-2, atol=5e-2), "mismatch vs reference"
    # Zero-padded params must keep padded output channels exactly zero.
    assert jnp.all(out_padded[:, out_size:] == 0.0)

    print("KERNEL_OK")
</pallas_src>

<mosaic_0001>
module attributes {stable_mosaic.version = 11 : i64} {
  func.func @_fused_layer_kernel(%arg0: i32, %arg1: memref<16x4xf32, #tpu.memory_space<vmem>>, %arg2: memref<128x128xbf16, #tpu.memory_space<vmem>>, %arg3: memref<8x128xf32, #tpu.memory_space<vmem>>, %arg4: memref<2x128xf32, #tpu.memory_space<vmem>>, %arg5: memref<16x128xf32, #tpu.memory_space<vmem>>) attributes {dimension_semantics = [#tpu.dimension_semantics<arbitrary>], iteration_bounds = array<i64: 3>, scalar_prefetch = 0 : i64, scratch_operands = 1 : i64, tpu.core_type = #tpu.core_type<tc>, window_params = [{pipeline_mode = #tpu.pipeline_mode<synchronous>, transform_indices = @transform_0, window_bounds = array<i64: 16, 4>}, {transform_indices = @transform_1, window_bounds = array<i64: 128, 128>}, {transform_indices = @transform_2, window_bounds = array<i64: 8, 128>}, {pipeline_mode = #tpu.pipeline_mode<synchronous>, transform_indices = @transform_3, window_bounds = array<i64: 2, 128>}]} {
    %c0_i32 = arith.constant 0 : i32
    %0 = arith.cmpi eq, %arg0, %c0_i32 : i32
    %1 = arith.extui %0 : i1 to i32
    %c0_i32_0 = arith.constant 0 : i32
    %2 = arith.cmpi ne, %1, %c0_i32_0 : i32
    scf.if %2 {
      %cst_16 = arith.constant 0.000000e+00 : f32
      %37 = vector.broadcast %cst_16 : f32 to vector<16x128xf32>
      %c0_17 = arith.constant 0 : index
      %c0_18 = arith.constant 0 : index
      %38 = vector.load %arg5[%c0_17, %c0_18] : memref<16x128xf32, #tpu.memory_space<vmem>>, vector<16x128xf32>
      tpu.vector_store %arg5[%c0_17, %c0_18], %37 {strides = array<i32>} : memref<16x128xf32, #tpu.memory_space<vmem>>, vector<16x128xf32>,
      %c0_19 = arith.constant 0 : index
      %c0_20 = arith.constant 0 : index
      %39 = vector.load %arg1[%c0_19, %c0_20] : memref<16x4xf32, #tpu.memory_space<vmem>>, vector<16x4xf32>
      %c0_21 = arith.constant 0 : index
      %c0_22 = arith.constant 0 : index
      %40 = vector.load %arg5[%c0_21, %c0_22] : memref<16x128xf32, #tpu.memory_space<vmem>>, vector<16x4xf32>
      tpu.vector_store %arg5[%c0_21, %c0_22], %39 {strides = array<i32>} : memref<16x128xf32, #tpu.memory_space<vmem>>, vector<16x4xf32>,
    } else {
    }
    %c0 = arith.constant 0 : index
    %c0_1 = arith.constant 0 : index
    %3 = vector.load %arg5[%c0, %c0_1] : memref<16x128xf32, #tpu.memory_space<vmem>>, vector<16x128xf32>
    %c0_2 = arith.constant 0 : index
    %c0_3 = arith.constant 0 : index
    %4 = vector.load %arg3[%c0_2, %c0_3] : memref<8x128xf32, #tpu.memory_space<vmem>>, vector<1x128xf32>
    %c1 = arith.constant 1 : index
    %c0_4 = arith.constant 0 : index
    %5 = vector.load %arg3[%c1, %c0_4] : memref<8x128xf32, #tpu.memory_space<vmem>>, vector<1x128xf32>
    %c2 = arith.constant 2 : index
    %c0_5 = arith.constant 0 : index
    %6 = vector.load %arg3[%c2, %c0_5] : memref<8x128xf32, #tpu.memory_space<vmem>>, vector<1x128xf32>
    %cst = arith.constant dense<0.000000e+00> : vector<128xf32>
    %7 = vector.multi_reduction <add>, %3, %cst [0] : vector<16x128xf32> to vector<128xf32>
    %8 = vector.shape_cast %7 : vector<128xf32> to vector<1x128xf32>
    %cst_6 = arith.constant 6.250000e-02 : f32
    %9 = vector.broadcast %cst_6 : f32 to vector<1x128xf32>
    %10 = arith.mulf %8, %9 : vector<1x128xf32>
    %11 = vector.broadcast %10 : vector<1x128xf32> to vector<16x128xf32>
    %12 = arith.subf %3, %11 : vector<16x128xf32>
    %13 = arith.mulf %12, %12 : vector<16x128xf32>
    %cst_7 = arith.constant dense<0.000000e+00> : vector<128xf32>
    %14 = vector.multi_reduction <add>, %13, %cst_7 [0] : vector<16x128xf32> to vector<128xf32>
    %15 = vector.shape_cast %14 : vector<128xf32> to vector<1x128xf32>
    %cst_8 = arith.constant 6.250000e-02 : f32
    %16 = vector.broadcast %cst_8 : f32 to vector<1x128xf32>
    %17 = arith.mulf %15, %16 : vector<1x128xf32>
    %cst_9 = arith.constant 9.99999974E-6 : f32
    %18 = vector.broadcast %cst_9 : f32 to vector<1x128xf32>
    %19 = arith.addf %17, %18 : vector<1x128xf32>
    %20 = math.rsqrt %19 : vector<1x128xf32>
    %21 = arith.mulf %5, %20 : vector<1x128xf32>
    %22 = vector.broadcast %21 : vector<1x128xf32> to vector<16x128xf32>
    %23 = arith.mulf %12, %22 : vector<16x128xf32>
    %24 = vector.broadcast %6 : vector<1x128xf32> to vector<16x128xf32>
    %25 = arith.addf %23, %24 : vector<16x128xf32>
    %26 = arith.truncf %25 : vector<16x128xf32> to vector<16x128xbf16>
    %c0_10 = arith.constant 0 : index
    %c0_11 = arith.constant 0 : index
    %27 = vector.load %arg2[%c0_10, %c0_11] : memref<128x128xbf16, #tpu.memory_space<vmem>>, vector<128x128xbf16>
    %cst_12 = arith.constant dense<0.000000e+00> : vector<16x128xf32>
    %28 = tpu.matmul %26, %27, %cst_12 {dimension_numbers = #tpu.dot_dimension_numbers<[1], [0], [0], [1], [0, 0, 1, 1], [], []>} : vector<16x128xbf16>, vector<128x128xbf16>, vector<16x128xf32> -> vector<16x128xf32>
    %29 = vector.broadcast %4 : vector<1x128xf32> to vector<16x128xf32>
    %30 = arith.addf %28, %29 : vector<16x128xf32>
    %c2_i32 = arith.constant 2 : i32
    %31 = arith.cmpi slt, %arg0, %c2_i32 : i32
    %32 = arith.extui %31 : i1 to i32
    %c0_i32_13 = arith.constant 0 : i32
    %33 = arith.cmpi ne, %32, %c0_i32_13 : i32
    scf.if %33 {
      %cst_16 = arith.constant 0.000000e+00 : f32
      %37 = vector.broadcast %cst_16 : f32 to vector<16x128xf32>
      %38 = arith.maximumf %30, %37 : vector<16x128xf32>
      %c0_17 = arith.constant 0 : index
      %c0_18 = arith.constant 0 : index
      %39 = vector.load %arg5[%c0_17, %c0_18] : memref<16x128xf32, #tpu.memory_space<vmem>>, vector<16x128xf32>
      tpu.vector_store %arg5[%c0_17, %c0_18], %38 {strides = array<i32>} : memref<16x128xf32, #tpu.memory_space<vmem>>, vector<16x128xf32>,
    } else {
    }
    %c2_i32_14 = arith.constant 2 : i32
    %34 = arith.cmpi eq, %arg0, %c2_i32_14 : i32
    %35 = arith.extui %34 : i1 to i32
    %c0_i32_15 = arith.constant 0 : i32
    %36 = arith.cmpi ne, %35, %c0_i32_15 : i32
    scf.if %36 {
      %37 = vector.shape_cast %30 : vector<16x128xf32> to vector<2x8x128xf32>
      %cst_16 = arith.constant dense<0xFF800000> : vector<2x128xf32>
      %38 = vector.multi_reduction <maximumf>, %37, %cst_16 [1] : vector<2x8x128xf32> to vector<2x128xf32>
      %c0_17 = arith.constant 0 : index
      %c0_18 = arith.constant 0 : index
      %39 = vector.load %arg4[%c0_17, %c0_18] : memref<2x128xf32, #tpu.memory_space<vmem>>, vector<2x128xf32>
      tpu.vector_store %arg4[%c0_17, %c0_18], %38 {strides = array<i32>} : memref<2x128xf32, #tpu.memory_space<vmem>>, vector<2x128xf32>,
    } else {
    }
    return
  }
  func.func @transform_0(%arg0: i32) -> (i32, i32) {
    %c0_i32 = arith.constant 0 : i32
    %c0_i32_0 = arith.constant 0 : i32
    %c0_i32_1 = arith.constant 0 : i32
    return %c0_i32, %c0_i32_0 : i32, i32
  }
  func.func @transform_1(%arg0: i32) -> (i32, i32) {
    %c0_i32 = arith.constant 0 : i32
    %c0_i32_0 = arith.constant 0 : i32
    return %arg0, %c0_i32 : i32, i32
  }
  func.func @transform_2(%arg0: i32) -> (i32, i32) {
    %c0_i32 = arith.constant 0 : i32
    %c0_i32_0 = arith.constant 0 : i32
    return %arg0, %c0_i32 : i32, i32
  }
  func.func @transform_3(%arg0: i32) -> (i32, i32) {
    %c0_i32 = arith.constant 0 : i32
    %c0_i32_0 = arith.constant 0 : i32
    %c0_i32_1 = arith.constant 0 : i32
    return %c0_i32, %c0_i32_0 : i32, i32
  }
}

</mosaic_0001>

<llo_original>
// kernel: set_transform_forward.1
$region0: #{set_transform_forward.1}
  #allocation0 [shape = 'u32[]', space=smem, size = 0x4, offset = 0x4, fixed_abs, tag = 'smem constant byte address 0x4 - core index']
  #allocation1 [shape = 'u32[72,128]{1,0:T(1,128)}', space=vmem, size = 0x9000, scoped, tag = 'internal scratch']
  #allocation2 [shape = 'f32[16,128]{1,0:T(8,128)}', space=vmem, size = 0x2000, scoped, tag = 'scratch operand']
  %s0 = inlined_call_operand.vmem [shape: f32[16,4], index: 0, kind: input, shape index: {}]
  %s1 = inlined_call_operand.hbm [shape: bf16[384,128], index: 1, kind: input, shape index: {}]
  %s2 = inlined_call_operand.vmem [shape: f32[24,128], index: 2, kind: input, shape index: {}]
  %s3 = inlined_call_operand.hbm [shape: f32[2,128], index: 3, kind: output, shape index: {}]
  %s4 = sld [smem:[#allocation0]]
  $region61: #{set_transform_forward.1} parent=0
    _
  %s6 = ssub.s32 1, %s4
  %s7 = scalar_select 0, %s6, %s4
  $region1: #{set_transform_forward.1} parent=0
    #allocation3 [shape = 'u8[65536]{0}', space=vmem, size = 0x10000, scoped, tag = 'input window, operand 1']
    #allocation4 [shape = 's32[2]{0}', space=sflag, size = 0x8, scoped, tag = 'scoped memory for set_transform_forward.1']
    #allocation5 [shape = 's32[2]{0}', space=sflag, size = 0x8, scoped, tag = 'scoped memory for set_transform_forward.1']
    #allocation6 [shape = 'u8[1024]{0}', space=vmem, size = 0x400, scoped, tag = 'output window, operand 0, single buffered']
    %8 = vsyncpa [#allocation4], 0
    %s9 = scalar_lea.sflag [#allocation4], 1
    %10 = vsyncpa %s9, 0
    %11 = vsyncpa [#allocation5], 0
    loop: start=0, step=1, limit=5
    $region2: #{set_transform_forward.1} parent=1 // loop_pre_header
      _
    $region3: #{set_transform_forward.1} parent=1 // loop_header
      %s13 = sphi 0, %s17
      %p14 = scmp.ge.s32.totalorder %s13, 5
      %s21 = sphi 0, %s21
      %s23 = sphi 0, %s21
      %s24 = sphi 0, %s23
      %s38 = sphi 0, %s24
      %s44 = sphi 0, %s46
      %s47 = sphi 0, %s44
      %s48 = sphi 0, %s47
      %s64 = sphi 0, %s48
      %s70 = sphi 0, %s72
      %s73 = sphi 0, %s70
      %s74 = sphi 0, %s73
      %s90 = sphi 0, %s74
      %s94 = sphi 0, %s94
      %s96 = sphi 0, %s94
      %s97 = sphi 0, %s96
      %s111 = sphi 0, %s97
    $region4: #{set_transform_forward.1} parent=1 // loop_header_branch
      %16 = sbr.rel (%p14) target = $region8
    $region5: #{set_transform_forward.1} parent=1 // loop_body
      %s18 = ssub.s32 %s13, 1
      %s19 = ssub.s32 %s13, 2
      %s20 = sadd.s32 %s13, 1
      %s22 = sadd.s32 %s21, 1
      %p25 = scmp.eq.s32.totalorder %s13, 2
      %p26 = scmp.ne.s32.totalorder %s21, %s23
      %p27 = scmp.eq.s32.totalorder %s13, 0
      %p28 = por %p26, %p27
      %p29 = scmp.ne.s32.totalorder %s21, %s23
      %p30 = scmp.eq.s32.totalorder %s18, 2
      %p31 = por %p29, %p30
      %p32 = scmp.ne.s32.totalorder %s23, %s24
      %p33 = scmp.eq.s32.totalorder %s18, 0
      %p34 = por %p32, %p33
      %p35 = scmp.ne.s32.totalorder %s23, %s24
      %p36 = scmp.eq.s32.totalorder %s19, 2
      %p37 = por %p35, %p36
      %p39 = scmp.ne.s32.totalorder %s24, %s38
      %p40 = scmp.eq.s32.totalorder %s19, 0
      %p41 = por %p39, %p40
      %s42 = ssub.s32 %s13, %s20
      %p43 = scmp.eq.s32.totalorder %s42, 0
      %s45 = sadd.s32 %s44, 1
      %s46 = scalar_select %p43, %s44, %s45
      %p49 = pneg %p43
      %p50 = scmp.eq.s32.totalorder %s13, 2
      %p51 = por %p49, %p50
      %p52 = scmp.ne.s32.totalorder %s44, %s47
      %p53 = scmp.eq.s32.totalorder %s13, 0
      %p54 = por %p52, %p53
      %p55 = scmp.ne.s32.totalorder %s44, %s47
      %p56 = scmp.eq.s32.totalorder %s18, 2
      %p57 = por %p55, %p56
      %p58 = scmp.ne.s32.totalorder %s47, %s48
      %p59 = scmp.eq.s32.totalorder %s18, 0
      %p60 = por %p58, %p59
      %p61 = scmp.ne.s32.totalorder %s47, %s48
      %p62 = scmp.eq.s32.totalorder %s19, 2
      %p63 = por %p61, %p62
      %p65 = scmp.ne.s32.totalorder %s48, %s64
      %p66 = scmp.eq.s32.totalorder %s19, 0
      %p67 = por %p65, %p66
      %s68 = ssub.s32 %s13, %s20
      %p69 = scmp.eq.s32.totalorder %s68, 0
      %s71 = sadd.s32 %s70, 1
      %s72 = scalar_select %p69, %s70, %s71
      %p75 = pneg %p69
      %p76 = scmp.eq.s32.totalorder %s13, 2
      %p77 = por %p75, %p76
      %p78 = scmp.ne.s32.totalorder %s70, %s73
      %p79 = scmp.eq.s32.totalorder %s13, 0
      %p80 = por %p78, %p79
      %p81 = scmp.ne.s32.totalorder %s70, %s73
      %p82 = scmp.eq.s32.totalorder %s18, 2
      %p83 = por %p81, %p82
      %p84 = scmp.ne.s32.totalorder %s73, %s74
      %p85 = scmp.eq.s32.totalorder %s18, 0
      %p86 = por %p84, %p85
      %p87 = scmp.ne.s32.totalorder %s73, %s74
      %p88 = scmp.eq.s32.totalorder %s19, 2
      %p89 = por %p87, %p88
      %p91 = scmp.ne.s32.totalorder %s74, %s90
      %p92 = scmp.eq.s32.totalorder %s19, 0
      %p93 = por %p91, %p92
      %s95 = sadd.s32 %s94, 1
      %p98 = scmp.eq.s32.totalorder %s13, 2
      %p99 = scmp.ne.s32.totalorder %s94, %s96
      %p100 = scmp.eq.s32.totalorder %s13, 0
      %p101 = por %p99, %p100
      %p102 = scmp.ne.s32.totalorder %s94, %s96
      %p103 = scmp.eq.s32.totalorder %s18, 2
      %p104 = por %p102, %p103
      %p105 = scmp.ne.s32.totalorder %s96, %s97
      %p106 = scmp.eq.s32.totalorder %s18, 0
      %p107 = por %p105, %p106
      %p108 = scmp.ne.s32.totalorder %s96, %s97
      %p109 = scmp.eq.s32.totalorder %s19, 2
      %p110 = por %p108, %p109
      %p112 = scmp.ne.s32.totalorder %s97, %s111
      %p113 = scmp.eq.s32.totalorder %s19, 0
      %p114 = por %p112, %p113
      %p115 = scmp.le.s32.totalorder 1, %s13
      %p116 = scmp.lt.s32.totalorder %s13, 4
      %p117 = pnand %p115, %p116
      %p118 = pneg %p117
      // Predicated region
      $region9: #{set_transform_forward.1} parent=5 // pred_check
        _
      $region10: #{set_transform_forward.1} parent=5 // pred_check_branch
        %120 = sbr.rel (%p117) target = $region12
      $region11: #{set_transform_forward.1} parent=5 // pred_region
        %s121 = ssub.s32 %s13, 1
        // Predicated region
        $region13: #{set_transform_forward.1} parent=11 // pred_check
          %p122 = pneg %p34
        $region14: #{set_transform_forward.1} parent=11 // pred_check_branch
          %124 = sbr.rel (%p122) target = $region16
        $region15: #{set_transform_forward.1} parent=11 // pred_region
          _
        $region16: #{set_transform_forward.1} parent=11 // pred_fallthru
          _
      $region12: #{set_transform_forward.1} parent=5 // pred_fallthru
        _
      %p125 = scmp.lt.s32.totalorder %s13, 3
      // Predicated region
      $region17: #{set_transform_forward.1} parent=5 // pred_check
        %p126 = pneg %p125
      $region18: #{set_transform_forward.1} parent=5 // pred_check_branch
        %128 = sbr.rel (%p126) target = $region20
      $region19: #{set_transform_forward.1} parent=5 // pred_region
        // Predicated region
        $region21: #{set_transform_forward.1} parent=19 // pred_check
          %p129 = pneg %p54
        $region22: #{set_transform_forward.1} parent=19 // pred_check_branch
          %131 = sbr.rel (%p129) target = $region24
        $region23: #{set_transform_forward.1} parent=19 // pred_region
          %s132 = sand.u32 %s44, 1
          %s133 = scalar_lea.sflag [#allocation4], %s132
          %s134 = sand.u32 %s44, 1
          %s135 = smul.addr %s134, 64
          %s136 = scalar_lea.vmem [#allocation3], %s135
          %s137 = smul.u32 16, %s13
          %139 = vsyncadd %s133, 0
          %s140 = smul.addr %s137, 4
          %s141 = scalar_lea.hbm %s1, %s140
          %s142 = sshll.u32 %s141, 4
          %s143 = int_to_ptr.hbm [resolvable:$true] %s142
          %s144 = sshll.u32 %s136, 4
          %s145 = int_to_ptr.vmem [resolvable:$true] %s144
          %150 = dma.hbm_to_vmem [thread:$0]  %s143, 1024, %s145, %s133, 64, 64, 4
        $region24: #{set_transform_forward.1} parent=19 // pred_fallthru
          _
        // Predicated region
        $region25: #{set_transform_forward.1} parent=19 // pred_check
          %p151 = pneg %p80
        $region26: #{set_transform_forward.1} parent=19 // pred_check_branch
          %153 = sbr.rel (%p151) target = $region28
        $region27: #{set_transform_forward.1} parent=19 // pred_region
          %p154 = scmp.lt.s32.totalorder %s13, 2
          %s155 = scalar_select %p154, %s13, 2
          %s156 = smul.addr %s155, 8
          %s157 = scalar_lea.vmem %s2, %s156
        $region28: #{set_transform_forward.1} parent=19 // pred_fallthru
          _
      $region20: #{set_transform_forward.1} parent=5 // pred_fallthru
        _
      %p158 = scmp.le.s32.totalorder 1, %s13
      %p159 = scmp.lt.s32.totalorder %s13, 4
      %p160 = pnand %p158, %p159
      %p161 = pneg %p160
      // Predicated region
      $region29: #{set_transform_forward.1} parent=5 // pred_check
        _
      $region30: #{set_transform_forward.1} parent=5 // pred_check_branch
        %163 = sbr.rel (%p160) target = $region32
      $region31: #{set_transform_forward.1} parent=5 // pred_region
        %s164 = ssub.s32 %s13, 1
        %s165 = sand.u32 %s47, 1
        %s166 = scalar_lea.sflag [#allocation4], %s165
        %s167 = sand.u32 %s47, 1
        %s168 = smul.addr %s167, 64
        %s169 = scalar_lea.vmem [#allocation3], %s168
        // Predicated region
        $region33: #{set_transform_forward.1} parent=31 // pred_check
          %p170 = pneg %p60
        $region34: #{set_transform_forward.1} parent=31 // pred_check_branch
          %172 = sbr.rel (%p170) target = $region36
        $region35: #{set_transform_forward.1} parent=31 // pred_region
          %174 = dma.done %s166, 1024
        $region36: #{set_transform_forward.1} parent=31 // pred_fallthru
          _
        %p175 = pneg %p34
        %p176 = pneg %p31
        %s177 = sand.u32 %s47, 1
        %s178 = scalar_lea.sflag [#allocation4], %s177
        %s179 = sand.u32 %s47, 1
        %s180 = smul.addr %s179, 64
        %s181 = scalar_lea.vmem [#allocation3], %s180
        %p182 = pneg %p60
        %p183 = pneg %p57
        %p184 = scmp.lt.s32.totalorder %s18, 2
        %s185 = scalar_select %p184, %s18, 2
        %s186 = smul.addr %s185, 8
        %s187 = scalar_lea.vmem %s2, %s186
        %p188 = pneg %p86
        %p189 = pneg %p83
        %p190 = pneg %p107
        %p191 = pneg %p104
        %s192 = smul.u32 16, %s18
        %p193 = scmp.lt.s32.totalorder %s18, 2
        %s194 = scalar_select %p193, %s18, 2
        %s195 = smul.addr %s194, 8
        %s196 = scalar_lea.vmem %s2, %s195
        %p197 = scmp.eq.s32.totalorder %s18, 0
        // Predicated region
        $region37: #{set_transform_forward.1} parent=31 // pred_check
          %p198 = pneg %p197
        $region38: #{set_transform_forward.1} parent=31 // pred_check_branch
          %200 = sbr.rel (%p198) target = $region40
        $region39: #{set_transform_forward.1} parent=31 // pred_region
          %201 = vst [vmem:[#allocation2] sm:$0xff] 0.0
          %202 = vst [vmem:[#allocation2 + $0x8] sm:$0xff] 0.0
          %v203 = vld [vmem:[%s0] sm:$0xff]
          %v204 = vld [vmem:[%s0 + $0x8] sm:$0xff]
          %vm205 = vcmask 31744
          %206 = vst.msk [vmem:[#allocation2] sm:$0xff] %vm205, %v203
          %207 = vst.msk [vmem:[#allocation2 + $0x8] sm:$0xff] %vm205, %v204
        $region40: #{set_transform_forward.1} parent=31 // pred_fallthru
          _
        %v208 = vld [vmem:[#allocation2] sm:$0xff]
        %v209 = vld [vmem:[#allocation2 + $0x8] sm:$0xff]
        %v210 = vld [vmem:[%s196] sm:$0x1]
        %v211 = vld [vmem:[%s196 + $0x1] sm:$0x1]
        %v212 = vld [vmem:[%s196 + $0x2] sm:$0x1]
        %v213 = vadd.f32 %v208, %v209
        %v214 = vrot.slane %v213, 4
        %v215 = vadd.f32 %v213, %v214
        %v216 = vrot.slane %v215, 2
        %v217 = vadd.f32 %v215, %v216
        %v218 = vrot.slane %v217, 1
        %v219 = vadd.f32 %v217, %v218
        %v220 = vmul.f32 %v219, 0.0625
        %v221 = vsub.f32 %v208, %v220
        %v222 = vsub.f32 %v209, %v220
        %v223 = vmul.f32 %v221, %v221
        %v224 = vmul.f32 %v222, %v222
        %v225 = vadd.f32 %v223, %v224
        %v226 = vrot.slane %v225, 4
        %v227 = vadd.f32 %v225, %v226
        %v228 = vrot.slane %v227, 2
        %v229 = vadd.f32 %v227, %v228
        %v230 = vrot.slane %v229, 1
        %v231 = vadd.f32 %v229, %v230
        %v232 = vmul.f32 %v231, 0.0625
        %v233 = vadd.f32 %v232, 1e-05
        %v234 = vrsqrt.pop %v233
        %v235 = vmul.f32 %v234, %v233
        %v236 = vmul.f32 %v235, %v234
        %v237 = vmul.f32 0.5, %v236
        %v238 = vsub.f32 1.5, %v237
        %v239 = vmul.f32 %v234, %v238
        %vm240 = vweird.f32 %v233
        %vm241 = vweird.f32 %v234
        %vm242 = vmor %vm240, %vm241
        %v243 = vsel %vm242, %v234, %v239
        %v244 = vmul.f32 %v211, %v243
        %v245 = vperm.slane %v244, 0
        %v246 = vmul.f32 %v221, %v245
        %v247 = vmul.f32 %v222, %v245
        %v248 = vperm.slane %v212, 0
        %v249 = vadd.f32 %v246, %v248
        %v250 = vadd.f32 %v247, %v248
        %v251 = vpack.c.bf16 %v250, %v249
        %v252 = vld [vmem:[%s169] sm:$0xf]
        %v253 = vld [vmem:[%s169 + $0x4] sm:$0xf]
        %v254 = vld [vmem:[%s169 + $0x8] sm:$0xf]
        %v255 = vld [vmem:[%s169 + $0xc] sm:$0xf]
        %v256 = vld [vmem:[%s169 + $0x10] sm:$0xf]
        %v257 = vld [vmem:[%s169 + $0x14] sm:$0xf]
        %v258 = vld [vmem:[%s169 + $0x18] sm:$0xf]
        %v259 = vld [vmem:[%s169 + $0x1c] sm:$0xf]
        %v260 = vld [vmem:[%s169 + $0x20] sm:$0xf]
        %v261 = vld [vmem:[%s169 + $0x24] sm:$0xf]
        %v262 = vld [vmem:[%s169 + $0x28] sm:$0xf]
        %v263 = vld [vmem:[%s169 + $0x2c] sm:$0xf]
        %v264 = vld [vmem:[%s169 + $0x30] sm:$0xf]
        %v265 = vld [vmem:[%s169 + $0x34] sm:$0xf]
        %v266 = vld [vmem:[%s169 + $0x38] sm:$0xf]
        %v267 = vld [vmem:[%s169 + $0x3c] sm:$0xf]
        %v268 = vperm.slane %v210, 0
        %v285 = vunpack.c.l.b16 %v252
        %v286 = vunpack.c.l.b16 %v253
        %v287 = vunpack.c.l.b16 %v254
        %v288 = vunpack.c.l.b16 %v255
        %v289 = vunpack.c.l.b16 %v256
        %v290 = vunpack.c.l.b16 %v257
        %v291 = vunpack.c.l.b16 %v258
        %v292 = vunpack.c.l.b16 %v259
        %v293 = vunpack.c.l.b16 %v260
        %v294 = vunpack.c.l.b16 %v261
        %v295 = vunpack.c.l.b16 %v262
        %v296 = vunpack.c.l.b16 %v263
        %v297 = vunpack.c.l.b16 %v264
        %v298 = vunpack.c.l.b16 %v265
        %v299 = vunpack.c.l.b16 %v266
        %v300 = vunpack.c.l.b16 %v267
        %v301 = vpack.c.b16 %v286, %v285
        %v302 = vpack.c.b16 %v288, %v287
        %v303 = vpack.c.b16 %v290, %v289
        %v304 = vpack.c.b16 %v292, %v291
        %v305 = vpack.c.b16 %v294, %v293
        %v306 = vpack.c.b16 %v296, %v295
        %v307 = vpack.c.b16 %v298, %v297
        %v308 = vpack.c.b16 %v300, %v299
        %317 = vmatpush.bf16.msra.mxu0 %v308
        %318 = vmatpush.bf16.msra.mxu0 %v307
        %319 = vmatpush.bf16.msra.mxu0 %v306
        %320 = vmatpush.bf16.msra.mxu0 %v305
        %321 = vmatpush.bf16.msra.mxu0 %v304
        %322 = vmatpush.bf16.msra.mxu0 %v303
        %323 = vmatpush.bf16.msra.mxu0 %v302
        %324 = vmatpush.bf16.msra.mxu0 %v301
        %325 = vmatmul.bf16.gmra.mxu0 %v251
        %v326 = vpop.f32.mrf.mxu0
        %v327 = vadd.f32 %v268, %v326
        %v328 = vpop.f32.mrf.mxu0
        %v329 = vadd.f32 %v268, %v328
        %330 = vdwg.mxu0
        %p331 = scmp.lt.s32.totalorder %s18, 2
        // Predicated region
        $region41: #{set_transform_forward.1} parent=31 // pred_check
          %p332 = pneg %p331
        $region42: #{set_transform_forward.1} parent=31 // pred_check_branch
          %334 = sbr.rel (%p332) target = $region44
        $region43: #{set_transform_forward.1} parent=31 // pred_region
          %v335 = vmax.f32 %v327, 0.0
          %v336 = vmax.f32 %v329, 0.0
          %337 = vst [vmem:[#allocation2] sm:$0xff] %v335
          %338 = vst [vmem:[#allocation2 + $0x8] sm:$0xff] %v336
        $region44: #{set_transform_forward.1} parent=31 // pred_fallthru
          _
        %p339 = scmp.eq.s32.totalorder %s18, 2
        // Predicated region
        $region45: #{set_transform_forward.1} parent=31 // pred_check
          %p340 = pneg %p339
        $region46: #{set_transform_forward.1} parent=31 // pred_check_branch
          %342 = sbr.rel (%p340) target = $region48
        $region47: #{set_transform_forward.1} parent=31 // pred_region
          %v343 = vrot.slane %v327, 4
          %v344 = vmax.f32 %v327, %v343
          %v345 = vrot.slane %v344, 2
          %v346 = vmax.f32 %v344, %v345
          %v347 = vrot.slane %v346, 1
          %v348 = vmax.f32 %v346, %v347
          %v349 = vrot.slane %v329, 4
          %v350 = vmax.f32 %v329, %v349
          %v351 = vrot.slane %v350, 2
          %v352 = vmax.f32 %v350, %v351
          %v353 = vrot.slane %v352, 1
          %v354 = vmax.f32 %v352, %v353
          %vm357 = vcmask 1041409
          %v358 = vsel %vm357, %v354, %v348
          %360 = vst [vmem:[#allocation6] sm:$0x3] %v358
        $region48: #{set_transform_forward.1} parent=31 // pred_fallthru
          _
        // Predicated region
        $region49: #{set_transform_forward.1} parent=31 // pred_check
          %p361 = pneg %p104
        $region50: #{set_transform_forward.1} parent=31 // pred_check_branch
          %363 = sbr.rel (%p361) target = $region52
        $region51: #{set_transform_forward.1} parent=31 // pred_region
          %365 = vsyncadd [#allocation5], 0
          %s367 = sshll.u32 [#allocation6], 4
          %s368 = int_to_ptr.vmem [resolvable:$true] %s367
          %s369 = sshll.u32 %s3, 4
          %s370 = int_to_ptr.hbm [resolvable:$true] %s369
          %372 = dma.vmem_to_hbm [thread:$0]  %s368, 32, %s370, [#allocation5]
        $region52: #{set_transform_forward.1} parent=31 // pred_fallthru
          _
        // Predicated region
        $region53: #{set_transform_forward.1} parent=31 // pred_check
          %p373 = pneg %p104
        $region54: #{set_transform_forward.1} parent=31 // pred_check_branch
          %375 = sbr.rel (%p373) target = $region56
        $region55: #{set_transform_forward.1} parent=31 // pred_region
          %377 = dma.done [#allocation5], 32
        $region56: #{set_transform_forward.1} parent=31 // pred_fallthru
          _
      $region32: #{set_transform_forward.1} parent=5 // pred_fallthru
        _
      %p378 = scmp.le.s32.totalorder 2, %s13
      // Predicated region
      $region57: #{set_transform_forward.1} parent=5 // pred_check
        %p379 = pneg %p378
      $region58: #{set_transform_forward.1} parent=5 // pred_check_branch
        %381 = sbr.rel (%p379) target = $region60
      $region59: #{set_transform_forward.1} parent=5 // pred_region
        %s382 = ssub.s32 %s13, 2
      $region60: #{set_transform_forward.1} parent=5 // pred_fallthru
        _
    $region6: #{set_transform_forward.1} parent=1 // loop_footer
      %s17 = sadd.s32 1, %s13
    $region7: #{set_transform_forward.1} parent=1 // loop_footer_branch
      %12 = sbr.rel target = $region3
    $region8: #{set_transform_forward.1} parent=1 // loop_exit
      _
    %383 = vsyncpa [#allocation4], 1
    %s384 = scalar_lea.sflag [#allocation4], 1
    %385 = vsyncpa %s384, 1
    %386 = vsyncpa [#allocation5], 1
    %s387 = scalar_lea.sflag [#allocation5], 1
    %388 = vsyncpa %s387, 1

</llo_original>
